<compile_context>
chip_gen: v5e
topology: v5e:2x2
jax: 0.10.0
libtpu: 0.0.40
codegen_flags: <defaults>
</compile_context>

<pallas_src>
import jax
import jax.numpy as jnp
from jax.experimental import pallas as pl
from jax.experimental.pallas import tpu as pltpu


def _make_kernel(tb: int, use_mxu: bool):
    """Build the kernel for a batch-fold factor `tb` and compute-unit choice."""

    def _compute(x, w, b):
        # x: (c_in, TN), w: (c_out, c_in), b: (c_out, 1)  ->  (c_out, TN) in f32
        if use_mxu:
            y = jnp.dot(w, x, preferred_element_type=jnp.float32)
        else:
            # Tiny contraction: unrolled VPU FMA (avoids padding a 128/256-wide
            # MXU tile that would be >99% zeros).
            wf = w.astype(jnp.float32)
            xf = x.astype(jnp.float32)
            c_in = w.shape[1]
            y = wf[:, 0:1] * xf[0:1, :]
            for ci in range(1, c_in):
                y = y + wf[:, ci:ci + 1] * xf[ci:ci + 1, :]
        return y + b.astype(jnp.float32)

    if tb == 1:
        # Batch dim squeezed away by the BlockSpec -> 2-D refs.
        def kernel(x_ref, w_ref, b_ref, o_ref):
            o_ref[...] = _compute(x_ref[...], w_ref[...], b_ref[...]).astype(o_ref.dtype)
    else:
        # Several batches per grid step; static (unrolled) loop over them.
        def kernel(x_ref, w_ref, b_ref, o_ref):
            w = w_ref[...]
            b = b_ref[...]
            for t in range(tb):
                o_ref[t] = _compute(x_ref[t], w, b).astype(o_ref.dtype)

    return kernel


def linear_combination_for_matrix(
    x,
    weight,
    bias,
    *,
    compute_dtype=None,            # e.g. jnp.bfloat16 on v6e/v7x (op is HBM-bound)
    max_tile_n=2048,               # upper bound on the lane tile
    vmem_tile_budget_bytes=12 * 1024 * 1024,  # for double-buffered x/out tiles
):
    """x: (B, C_in, N), weight: (C_out, C_in), bias: (C_out,) -> (B, C_out, N)."""
    B, c_in, N = x.shape
    c_out, c_in_w = weight.shape
    assert c_in_w == c_in, "weight shape mismatch"

    out_dtype = x.dtype            # output keeps the caller's dtype
    if compute_dtype is not None:
        x = x.astype(compute_dtype)
        weight = weight.astype(compute_dtype)
    bias2d = bias.reshape(c_out, 1).astype(jnp.float32)

    in_itemsize = jnp.dtype(x.dtype).itemsize
    out_itemsize = jnp.dtype(out_dtype).itemsize

    # ---- lane (N) tile: largest 128-multiple fitting the VMEM budget ----------
    per_col_bytes = 2 * (c_in * in_itemsize + c_out * out_itemsize)  # x2 double-buffer
    tn_cap = (vmem_tile_budget_bytes // per_col_bytes) // 128 * 128
    tn_cap = max(128, min(max_tile_n, tn_cap))
    tile_n = N if N <= tn_cap else tn_cap          # full dim is always legal

    # ---- batch folding when the lane slab is small -----------------------------
    tb = 1
    if tile_n == N and N < 256:
        target = max(1, min(8, 1024 // max(N, 1)))
        for cand in range(min(B, target), 0, -1):
            if B % cand == 0:
                tb = cand
                break

    # ---- compute-unit choice ---------------------------------------------------
    use_mxu = c_in > 8

    kernel = _make_kernel(tb, use_mxu)
    grid = (B // tb, pl.cdiv(N, tile_n))

    if tb == 1:
        x_spec = pl.BlockSpec((pl.Squeezed(), c_in, tile_n), lambda b, n: (b, 0, n))
        o_spec = pl.BlockSpec((pl.Squeezed(), c_out, tile_n), lambda b, n: (b, 0, n))
    else:
        x_spec = pl.BlockSpec((tb, c_in, tile_n), lambda b, n: (b, 0, n))
        o_spec = pl.BlockSpec((tb, c_out, tile_n), lambda b, n: (b, 0, n))

    # Weight / bias stay resident in VMEM across the whole grid (same block index).
    w_spec = pl.BlockSpec((c_out, c_in), lambda b, n: (0, 0))
    b_spec = pl.BlockSpec((c_out, 1), lambda b, n: (0, 0))

    cost = pl.CostEstimate(
        flops=2 * B * c_out * c_in * N,
        transcendentals=0,
        bytes_accessed=(B * c_in * N * in_itemsize
                        + c_out * c_in * in_itemsize
                        + c_out * 4
                        + B * c_out * N * out_itemsize),
    )

    return pl.pallas_call(
        kernel,
        out_shape=jax.ShapeDtypeStruct((B, c_out, N), out_dtype),
        grid_spec=pltpu.PrefetchScalarGridSpec(
            num_scalar_prefetch=0,
            grid=grid,
            in_specs=[x_spec, w_spec, b_spec],
            out_specs=o_spec,
        ),
        compiler_params=pltpu.CompilerParams(
            dimension_semantics=("parallel", "parallel"),
            vmem_limit_bytes=32 * 1024 * 1024,
        ),
        cost_estimate=cost,
    )(x, weight, bias2d)


def _reference(x, weight, bias):
    # Pure-JAX mirror of the PyTorch forward:
    # (x.transpose(-1,-2) @ W.T + b).transpose(-2,-1)
    return jnp.einsum("oc,bcn->bon", weight, x) + bias[None, :, None]


if __name__ == "__main__":
    key = jax.random.PRNGKey(0)

    # --- case 1: tiny channels (VPU FMA path + batch folding), module-like shapes
    B, C_IN, C_OUT, N = 2, 4, 8, 16
    kx, kw, kb, key = jax.random.split(key, 4)
    bound = 1.0 / (C_IN ** 0.5)
    weight = jax.random.uniform(kw, (C_OUT, C_IN), jnp.float32, -bound, bound)
    bias = jax.random.uniform(kb, (C_OUT,), jnp.float32, -bound, bound)
    x = jax.random.normal(kx, (B, C_IN, N), jnp.float32)

    y = jax.block_until_ready(linear_combination_for_matrix(x, weight, bias))
    ref = _reference(x, weight, bias)
    assert y.shape == (B, C_OUT, N)
    assert jnp.allclose(y, ref, atol=1e-5, rtol=1e-5), "mismatch (VPU path)"

    # --- case 2: larger channels (MXU path, squeezed batch dim) ---------------
    B2, C_IN2, C_OUT2, N2 = 2, 32, 64, 256
    kx2, kw2, kb2, key = jax.random.split(key, 4)
    bound2 = 1.0 / (C_IN2 ** 0.5)
    weight2 = jax.random.uniform(kw2, (C_OUT2, C_IN2), jnp.float32, -bound2, bound2)
    bias2 = jax.random.uniform(kb2, (C_OUT2,), jnp.float32, -bound2, bound2)
    x2 = jax.random.normal(kx2, (B2, C_IN2, N2), jnp.float32)

    y2 = jax.block_until_ready(linear_combination_for_matrix(x2, weight2, bias2))
    ref2 = _reference(x2, weight2, bias2)
    assert y2.shape == (B2, C_OUT2, N2)
    assert jnp.allclose(y2, ref2, atol=1e-4, rtol=1e-4), "mismatch (MXU path)"

    print("KERNEL_OK")
</pallas_src>

<mosaic_0001>
module attributes {stable_mosaic.version = 11 : i64} {
  func.func @kernel(%arg0: i32, %arg1: i32, %arg2: memref<2x4x16xf32, #tpu.memory_space<vmem>>, %arg3: memref<8x4xf32, #tpu.memory_space<vmem>>, %arg4: memref<8x1xf32, #tpu.memory_space<vmem>>, %arg5: memref<2x8x16xf32, #tpu.memory_space<vmem>>) attributes {dimension_semantics = [#tpu.dimension_semantics<parallel>, #tpu.dimension_semantics<parallel>], iteration_bounds = array<i64: 1, 1>, scalar_prefetch = 0 : i64, scratch_operands = 0 : i64, tpu.core_type = #tpu.core_type<tc>, window_params = [{transform_indices = @transform_0, window_bounds = array<i64: 2, 4, 16>}, {pipeline_mode = #tpu.pipeline_mode<synchronous>, transform_indices = @transform_1, window_bounds = array<i64: 8, 4>}, {pipeline_mode = #tpu.pipeline_mode<synchronous>, transform_indices = @transform_2, window_bounds = array<i64: 8, 1>}, {transform_indices = @transform_3, window_bounds = array<i64: 2, 8, 16>}]} {
    %c0 = arith.constant 0 : index
    %c0_0 = arith.constant 0 : index
    %0 = vector.load %arg3[%c0, %c0_0] : memref<8x4xf32, #tpu.memory_space<vmem>>, vector<8x4xf32>
    %c0_1 = arith.constant 0 : index
    %c0_2 = arith.constant 0 : index
    %1 = vector.load %arg4[%c0_1, %c0_2] : memref<8x1xf32, #tpu.memory_space<vmem>>, vector<8x1xf32>
    %c0_3 = arith.constant 0 : index
    %c0_4 = arith.constant 0 : index
    %c0_5 = arith.constant 0 : index
    %2 = vector.load %arg2[%c0_3, %c0_4, %c0_5] : memref<2x4x16xf32, #tpu.memory_space<vmem>>, vector<1x4x16xf32>
    %3 = vector.shape_cast %2 : vector<1x4x16xf32> to vector<4x16xf32>
    %4 = vector.extract_strided_slice %0 {offsets = [0, 0], sizes = [8, 1], strides = [1, 1]} : vector<8x4xf32> to vector<8x1xf32>
    %5 = vector.extract_strided_slice %3 {offsets = [0, 0], sizes = [1, 16], strides = [1, 1]} : vector<4x16xf32> to vector<1x16xf32>
    %6 = vector.broadcast %4 : vector<8x1xf32> to vector<8x16xf32>
    %7 = vector.broadcast %5 : vector<1x16xf32> to vector<8x16xf32>
    %8 = arith.mulf %6, %7 : vector<8x16xf32>
    %9 = vector.extract_strided_slice %0 {offsets = [0, 1], sizes = [8, 1], strides = [1, 1]} : vector<8x4xf32> to vector<8x1xf32>
    %10 = vector.extract_strided_slice %3 {offsets = [1, 0], sizes = [1, 16], strides = [1, 1]} : vector<4x16xf32> to vector<1x16xf32>
    %11 = vector.broadcast %9 : vector<8x1xf32> to vector<8x16xf32>
    %12 = vector.broadcast %10 : vector<1x16xf32> to vector<8x16xf32>
    %13 = arith.mulf %11, %12 : vector<8x16xf32>
    %14 = arith.addf %8, %13 : vector<8x16xf32>
    %15 = vector.extract_strided_slice %0 {offsets = [0, 2], sizes = [8, 1], strides = [1, 1]} : vector<8x4xf32> to vector<8x1xf32>
    %16 = vector.extract_strided_slice %3 {offsets = [2, 0], sizes = [1, 16], strides = [1, 1]} : vector<4x16xf32> to vector<1x16xf32>
    %17 = vector.broadcast %15 : vector<8x1xf32> to vector<8x16xf32>
    %18 = vector.broadcast %16 : vector<1x16xf32> to vector<8x16xf32>
    %19 = arith.mulf %17, %18 : vector<8x16xf32>
    %20 = arith.addf %14, %19 : vector<8x16xf32>
    %21 = vector.extract_strided_slice %0 {offsets = [0, 3], sizes = [8, 1], strides = [1, 1]} : vector<8x4xf32> to vector<8x1xf32>
    %22 = vector.extract_strided_slice %3 {offsets = [3, 0], sizes = [1, 16], strides = [1, 1]} : vector<4x16xf32> to vector<1x16xf32>
    %23 = vector.broadcast %21 : vector<8x1xf32> to vector<8x16xf32>
    %24 = vector.broadcast %22 : vector<1x16xf32> to vector<8x16xf32>
    %25 = arith.mulf %23, %24 : vector<8x16xf32>
    %26 = arith.addf %20, %25 : vector<8x16xf32>
    %27 = vector.broadcast %1 : vector<8x1xf32> to vector<8x16xf32>
    %28 = arith.addf %26, %27 : vector<8x16xf32>
    %c0_6 = arith.constant 0 : index
    %c0_7 = arith.constant 0 : index
    %c0_8 = arith.constant 0 : index
    %29 = vector.load %arg5[%c0_6, %c0_7, %c0_8] : memref<2x8x16xf32, #tpu.memory_space<vmem>>, vector<1x8x16xf32>
    %30 = vector.shape_cast %29 : vector<1x8x16xf32> to vector<8x16xf32>
    %31 = vector.shape_cast %28 : vector<8x16xf32> to vector<1x8x16xf32>
    tpu.vector_store %arg5[%c0_6, %c0_7, %c0_8], %31 {strides = array<i32>} : memref<2x8x16xf32, #tpu.memory_space<vmem>>, vector<1x8x16xf32>,
    %c1 = arith.constant 1 : index
    %c0_9 = arith.constant 0 : index
    %c0_10 = arith.constant 0 : index
    %32 = vector.load %arg2[%c1, %c0_9, %c0_10] : memref<2x4x16xf32, #tpu.memory_space<vmem>>, vector<1x4x16xf32>
    %33 = vector.shape_cast %32 : vector<1x4x16xf32> to vector<4x16xf32>
    %34 = vector.extract_strided_slice %0 {offsets = [0, 0], sizes = [8, 1], strides = [1, 1]} : vector<8x4xf32> to vector<8x1xf32>
    %35 = vector.extract_strided_slice %33 {offsets = [0, 0], sizes = [1, 16], strides = [1, 1]} : vector<4x16xf32> to vector<1x16xf32>
    %36 = vector.broadcast %34 : vector<8x1xf32> to vector<8x16xf32>
    %37 = vector.broadcast %35 : vector<1x16xf32> to vector<8x16xf32>
    %38 = arith.mulf %36, %37 : vector<8x16xf32>
    %39 = vector.extract_strided_slice %0 {offsets = [0, 1], sizes = [8, 1], strides = [1, 1]} : vector<8x4xf32> to vector<8x1xf32>
    %40 = vector.extract_strided_slice %33 {offsets = [1, 0], sizes = [1, 16], strides = [1, 1]} : vector<4x16xf32> to vector<1x16xf32>
    %41 = vector.broadcast %39 : vector<8x1xf32> to vector<8x16xf32>
    %42 = vector.broadcast %40 : vector<1x16xf32> to vector<8x16xf32>
    %43 = arith.mulf %41, %42 : vector<8x16xf32>
    %44 = arith.addf %38, %43 : vector<8x16xf32>
    %45 = vector.extract_strided_slice %0 {offsets = [0, 2], sizes = [8, 1], strides = [1, 1]} : vector<8x4xf32> to vector<8x1xf32>
    %46 = vector.extract_strided_slice %33 {offsets = [2, 0], sizes = [1, 16], strides = [1, 1]} : vector<4x16xf32> to vector<1x16xf32>
    %47 = vector.broadcast %45 : vector<8x1xf32> to vector<8x16xf32>
    %48 = vector.broadcast %46 : vector<1x16xf32> to vector<8x16xf32>
    %49 = arith.mulf %47, %48 : vector<8x16xf32>
    %50 = arith.addf %44, %49 : vector<8x16xf32>
    %51 = vector.extract_strided_slice %0 {offsets = [0, 3], sizes = [8, 1], strides = [1, 1]} : vector<8x4xf32> to vector<8x1xf32>
    %52 = vector.extract_strided_slice %33 {offsets = [3, 0], sizes = [1, 16], strides = [1, 1]} : vector<4x16xf32> to vector<1x16xf32>
    %53 = vector.broadcast %51 : vector<8x1xf32> to vector<8x16xf32>
    %54 = vector.broadcast %52 : vector<1x16xf32> to vector<8x16xf32>
    %55 = arith.mulf %53, %54 : vector<8x16xf32>
    %56 = arith.addf %50, %55 : vector<8x16xf32>
    %57 = vector.broadcast %1 : vector<8x1xf32> to vector<8x16xf32>
    %58 = arith.addf %56, %57 : vector<8x16xf32>
    %c1_11 = arith.constant 1 : index
    %c0_12 = arith.constant 0 : index
    %c0_13 = arith.constant 0 : index
    %59 = vector.load %arg5[%c1_11, %c0_12, %c0_13] : memref<2x8x16xf32, #tpu.memory_space<vmem>>, vector<1x8x16xf32>
    %60 = vector.shape_cast %59 : vector<1x8x16xf32> to vector<8x16xf32>
    %61 = vector.shape_cast %58 : vector<8x16xf32> to vector<1x8x16xf32>
    tpu.vector_store %arg5[%c1_11, %c0_12, %c0_13], %61 {strides = array<i32>} : memref<2x8x16xf32, #tpu.memory_space<vmem>>, vector<1x8x16xf32>,
    return
  }
  func.func @transform_0(%arg0: i32, %arg1: i32) -> (i32, i32, i32) {
    %c0_i32 = arith.constant 0 : i32
    %c0_i32_0 = arith.constant 0 : i32
    return %arg0, %c0_i32, %arg1 : i32, i32, i32
  }
  func.func @transform_1(%arg0: i32, %arg1: i32) -> (i32, i32) {
    %c0_i32 = arith.constant 0 : i32
    %c0_i32_0 = arith.constant 0 : i32
    %c0_i32_1 = arith.constant 0 : i32
    return %c0_i32, %c0_i32_0 : i32, i32
  }
  func.func @transform_2(%arg0: i32, %arg1: i32) -> (i32, i32) {
    %c0_i32 = arith.constant 0 : i32
    %c0_i32_0 = arith.constant 0 : i32
    %c0_i32_1 = arith.constant 0 : i32
    return %c0_i32, %c0_i32_0 : i32, i32
  }
  func.func @transform_3(%arg0: i32, %arg1: i32) -> (i32, i32, i32) {
    %c0_i32 = arith.constant 0 : i32
    %c0_i32_0 = arith.constant 0 : i32
    return %arg0, %c0_i32, %arg1 : i32, i32, i32
  }
}

</mosaic_0001>

<llo_original>
// kernel: tpu_custom_call.1
$region0: #{tpu_custom_call.1}
  #allocation0 [shape = 'u32[]', space=smem, size = 0x4, offset = 0x4, fixed_abs, tag = 'smem constant byte address 0x4 - core index']
  #allocation1 [shape = 'u32[72,128]{1,0:T(1,128)}', space=vmem, size = 0x9000, scoped, tag = 'internal scratch']
  %s0 = inlined_call_operand.vmem [shape: f32[2,4,16], index: 0, kind: input, shape index: {}]
  %s1 = inlined_call_operand.vmem [shape: f32[8,4], index: 1, kind: input, shape index: {}]
  %s2 = inlined_call_operand.vmem [shape: f32[8,1], index: 2, kind: input, shape index: {}]
  %s3 = inlined_call_operand.hbm [shape: f32[2,8,16], index: 3, kind: output, shape index: {}]
  %s4 = sld [smem:[#allocation0]]
  $region22: #{tpu_custom_call.1} parent=0
    _
  %s6 = ssub.s32 1, %s4
  %s7 = scalar_select 0, %s6, %s4
  $region1: #{tpu_custom_call.1} parent=0
    #allocation2 [shape = 'u8[8192]{0}', space=vmem, size = 0x2000, scoped, tag = 'output window, operand 0, single buffered']
    #allocation3 [shape = 's32[1]{0}', space=sflag, size = 0x4, scoped, tag = 'scoped memory for tpu_custom_call.1']
    %8 = vsyncpa [#allocation3], 0
    // Predicated region
    $region2: #{tpu_custom_call.1} parent=1 // pred_check
      _
    $region3: #{tpu_custom_call.1} parent=1 // pred_check_branch
      %10 = sbr.rel (0) target = $region5
    $region4: #{tpu_custom_call.1} parent=1 // pred_region
      _
    $region5: #{tpu_custom_call.1} parent=1 // pred_fallthru
      _
    // Predicated region
    $region6: #{tpu_custom_call.1} parent=1 // pred_check
      _
    $region7: #{tpu_custom_call.1} parent=1 // pred_check_branch
      %12 = sbr.rel (0) target = $region9
    $region8: #{tpu_custom_call.1} parent=1 // pred_region
      _
    $region9: #{tpu_custom_call.1} parent=1 // pred_fallthru
      _
    // Predicated region
    $region10: #{tpu_custom_call.1} parent=1 // pred_check
      _
    $region11: #{tpu_custom_call.1} parent=1 // pred_check_branch
      %14 = sbr.rel (0) target = $region13
    $region12: #{tpu_custom_call.1} parent=1 // pred_region
      _
    $region13: #{tpu_custom_call.1} parent=1 // pred_fallthru
      _
    %v15 = vld [vmem:[%s1] sm:$0xff]
    %v16 = vld [vmem:[%s2] sm:$0xff]
    %v17 = vld [vmem:[%s0] sm:$0xf]
    %19 = vset.pattern.permute.xlu0 0
    %20 = vperm.xlu0 %19, %v15
    %v21 = vpop.permute.xlu0 %20
    %v23 = vperm.slane %v17, 0
    %v24 = vmul.f32 %v21, %v23
    %25 = vset.pattern.permute.xlu0 1
    %26 = vperm.xlu0 %25, %v15
    %v27 = vpop.permute.xlu0 %26
    %v29 = vperm.slane %v17, 1
    %v30 = vmul.f32 %v27, %v29
    %v31 = vadd.f32 %v24, %v30
    %32 = vset.pattern.permute.xlu0 2
    %33 = vperm.xlu0 %32, %v15
    %v34 = vpop.permute.xlu0 %33
    %v36 = vperm.slane %v17, 2
    %v37 = vmul.f32 %v34, %v36
    %v38 = vadd.f32 %v31, %v37
    %39 = vset.pattern.permute.xlu0 3
    %40 = vperm.xlu0 %39, %v15
    %v41 = vpop.permute.xlu0 %40
    %v43 = vperm.slane %v17, 3
    %v44 = vmul.f32 %v41, %v43
    %v45 = vadd.f32 %v38, %v44
    %47 = vset.pattern.permute.xlu0 0
    %48 = vperm.xlu0 %47, %v16
    %v49 = vpop.permute.xlu0 %48
    %v51 = vadd.f32 %v45, %v49
    %vm52 = vcmask 130048
    %53 = vst.msk [vmem:[#allocation2] sm:$0xff] %vm52, %v51
    %s54 = scalar_lea.vmem %s0, 4
    %v55 = vld [vmem:[%s54] sm:$0xf]
    %v56 = vperm.slane %v55, 0
    %v57 = vmul.f32 %v21, %v56
    %v58 = vperm.slane %v55, 1
    %v59 = vmul.f32 %v27, %v58
    %v60 = vadd.f32 %v57, %v59
    %v61 = vperm.slane %v55, 2
    %v62 = vmul.f32 %v34, %v61
    %v63 = vadd.f32 %v60, %v62
    %v64 = vperm.slane %v55, 3
    %v65 = vmul.f32 %v41, %v64
    %v66 = vadd.f32 %v63, %v65
    %v67 = vadd.f32 %v66, %v49
    %s68 = scalar_lea.vmem [#allocation2], 8
    %69 = vst.msk [vmem:[%s68] sm:$0xff] %vm52, %v67
    // Predicated region
    $region14: #{tpu_custom_call.1} parent=1 // pred_check
      _
    $region15: #{tpu_custom_call.1} parent=1 // pred_check_branch
      %71 = sbr.rel (0) target = $region17
    $region16: #{tpu_custom_call.1} parent=1 // pred_region
      %73 = vsyncadd [#allocation3], 0
      %s74 = sshll.u32 [#allocation2], 4
      %s75 = int_to_ptr.vmem [resolvable:$true] %s74
      %s76 = sshll.u32 %s3, 4
      %s77 = int_to_ptr.hbm [resolvable:$true] %s76
      %82 = dma.vmem_to_hbm [thread:$0]  %s75, 256, %s77, [#allocation3], 128, 128, 8
    $region17: #{tpu_custom_call.1} parent=1 // pred_fallthru
      _
    // Predicated region
    $region18: #{tpu_custom_call.1} parent=1 // pred_check
      _
    $region19: #{tpu_custom_call.1} parent=1 // pred_check_branch
      %84 = sbr.rel (0) target = $region21
    $region20: #{tpu_custom_call.1} parent=1 // pred_region
      %86 = dma.done [#allocation3], 256
    $region21: #{tpu_custom_call.1} parent=1 // pred_fallthru
      _
    %87 = vsyncpa [#allocation3], 1

</llo_original>
